<compile_context>
chip_gen: v7x
topology: tpu7x:2x2x1
jax: 0.10.0
libtpu: 0.0.40
codegen_flags: <defaults>
</compile_context>

<pallas_src>
from functools import partial

import jax
import jax.numpy as jnp
from jax.experimental import pallas as pl
from jax.experimental.pallas import tpu as pltpu


def fused_kernel(z_ref, d_ref, o_ref, *, n_batch, n_chan):
    """dropout(log_softmax(elu(|z2|), dim=C), p=0.3) on a (N*C, OH*OW) layout.

    z_ref : uniform [0,1) randoms standing in for z2 = rand_like(conv_out)
    d_ref : uniform [0,1) randoms for the dropout mask
    o_ref : output, rows ordered (n, c) so it reshapes straight to NCHW
    """
    inv_keep = jnp.float32(1.0 / 0.7)          # dropout p=0.3 -> scale kept by 1/(1-p)
    thresh = jnp.float32(0.3)

    for n in range(n_batch):                   # tiny static loop, unrolled at trace time
        base = n * n_chan
        # elu(|z2|) == z2 for z2 in [0,1): abs and elu are identities on >= 0 input.
        rows = [z_ref[base + c: base + c + 1, :] for c in range(n_chan)]

        # Elementwise log-sum-exp over the (small) channel set: pure VPU/EUP work,
        # no axis reductions.
        m = rows[0]
        for c in range(1, n_chan):
            m = jnp.maximum(m, rows[c])
        s = jnp.exp(rows[0] - m)
        for c in range(1, n_chan):
            s = s + jnp.exp(rows[c] - m)
        lse = m + jnp.log(s)

        for c in range(n_chan):
            r = base + c
            keep = d_ref[r: r + 1, :] >= thresh
            o_ref[r: r + 1, :] = jnp.where(
                keep, (rows[c] - lse) * inv_keep, jnp.float32(0.0)
            )


def model_forward(x1, key):
    # Conv2d(2, 2, kernel_size=2): output spatial shape only (values are dead).
    N, _, H, W = x1.shape
    Cout, KH, KW = 2, 2, 2
    OH, OW = H - KH + 1, W - KW + 1
    S = OH * OW

    # One random draw: [0] -> z2 = rand_like(conv_out), [1] -> dropout uniforms.
    u = jax.random.uniform(key, (2, N * Cout, S), dtype=jnp.float32)

    out2d = pl.pallas_call(
        partial(fused_kernel, n_batch=N, n_chan=Cout),
        out_shape=jax.ShapeDtypeStruct((N * Cout, S), jnp.float32),
        in_specs=[
            pl.BlockSpec(memory_space=pltpu.MemorySpace.VMEM),
            pl.BlockSpec(memory_space=pltpu.MemorySpace.VMEM),
        ],
        out_specs=pl.BlockSpec(memory_space=pltpu.MemorySpace.VMEM),
    )(u[0], u[1])

    # Rows are already in (n, c) order -> NCHW is a free reshape (no transpose).
    return out2d.reshape(N, Cout, OH, OW)


if __name__ == "__main__":
    key = jax.random.PRNGKey(0)
    kx, kr = jax.random.split(key)

    # x1 = torch.randn(2, 2, 5, 5)
    x1 = jax.random.normal(kx, (2, 2, 5, 5), dtype=jnp.float32)

    out = model_forward(x1, kr)
    jax.block_until_ready(out)

    assert out.shape == (2, 2, 4, 4) and out.dtype == jnp.float32
    # Sanity: dropped positions are exactly 0, kept positions are finite log-probs <= 0 scaled.
    assert bool(jnp.all(jnp.isfinite(out)))
    print("KERNEL_OK")
</pallas_src>

<mosaic_0001>
module attributes {stable_mosaic.version = 11 : i64} {
  func.func @fused_kernel(%arg0: memref<4x16xf32, #tpu.memory_space<vmem>>, %arg1: memref<4x16xf32, #tpu.memory_space<vmem>>, %arg2: memref<4x16xf32, #tpu.memory_space<vmem>>) attributes {dimension_semantics = [], scalar_prefetch = 0 : i64, scratch_operands = 0 : i64, tpu.core_type = #tpu.core_type<tc>} {
    %c0 = arith.constant 0 : index
    %c0_0 = arith.constant 0 : index
    %0 = vector.load %arg0[%c0, %c0_0] : memref<4x16xf32, #tpu.memory_space<vmem>>, vector<1x16xf32>
    %c1 = arith.constant 1 : index
    %c0_1 = arith.constant 0 : index
    %1 = vector.load %arg0[%c1, %c0_1] : memref<4x16xf32, #tpu.memory_space<vmem>>, vector<1x16xf32>
    %2 = arith.maximumf %0, %1 : vector<1x16xf32>
    %3 = arith.subf %0, %2 : vector<1x16xf32>
    %4 = math.exp %3 : vector<1x16xf32>
    %5 = arith.subf %1, %2 : vector<1x16xf32>
    %6 = math.exp %5 : vector<1x16xf32>
    %7 = arith.addf %4, %6 : vector<1x16xf32>
    %8 = math.log %7 : vector<1x16xf32>
    %9 = arith.addf %2, %8 : vector<1x16xf32>
    %c0_2 = arith.constant 0 : index
    %c0_3 = arith.constant 0 : index
    %10 = vector.load %arg1[%c0_2, %c0_3] : memref<4x16xf32, #tpu.memory_space<vmem>>, vector<1x16xf32>
    %cst = arith.constant 3.000000e-01 : f32
    %11 = vector.broadcast %cst : f32 to vector<1x16xf32>
    %12 = arith.cmpf oge, %10, %11 : vector<1x16xf32>
    %13 = arith.subf %0, %9 : vector<1x16xf32>
    %cst_4 = arith.constant 1.42857146 : f32
    %14 = vector.broadcast %cst_4 : f32 to vector<1x16xf32>
    %15 = arith.mulf %13, %14 : vector<1x16xf32>
    %cst_5 = arith.constant 0.000000e+00 : f32
    %16 = vector.broadcast %cst_5 : f32 to vector<1x16xf32>
    %17 = arith.select %12, %15, %16 : vector<1x16xi1>, vector<1x16xf32>
    %c0_6 = arith.constant 0 : index
    %c0_7 = arith.constant 0 : index
    %18 = vector.load %arg2[%c0_6, %c0_7] : memref<4x16xf32, #tpu.memory_space<vmem>>, vector<1x16xf32>
    tpu.vector_store %arg2[%c0_6, %c0_7], %17 {strides = array<i32>} : memref<4x16xf32, #tpu.memory_space<vmem>>, vector<1x16xf32>,
    %c1_8 = arith.constant 1 : index
    %c0_9 = arith.constant 0 : index
    %19 = vector.load %arg1[%c1_8, %c0_9] : memref<4x16xf32, #tpu.memory_space<vmem>>, vector<1x16xf32>
    %cst_10 = arith.constant 3.000000e-01 : f32
    %20 = vector.broadcast %cst_10 : f32 to vector<1x16xf32>
    %21 = arith.cmpf oge, %19, %20 : vector<1x16xf32>
    %22 = arith.subf %1, %9 : vector<1x16xf32>
    %cst_11 = arith.constant 1.42857146 : f32
    %23 = vector.broadcast %cst_11 : f32 to vector<1x16xf32>
    %24 = arith.mulf %22, %23 : vector<1x16xf32>
    %cst_12 = arith.constant 0.000000e+00 : f32
    %25 = vector.broadcast %cst_12 : f32 to vector<1x16xf32>
    %26 = arith.select %21, %24, %25 : vector<1x16xi1>, vector<1x16xf32>
    %c1_13 = arith.constant 1 : index
    %c0_14 = arith.constant 0 : index
    %27 = vector.load %arg2[%c1_13, %c0_14] : memref<4x16xf32, #tpu.memory_space<vmem>>, vector<1x16xf32>
    tpu.vector_store %arg2[%c1_13, %c0_14], %26 {strides = array<i32>} : memref<4x16xf32, #tpu.memory_space<vmem>>, vector<1x16xf32>,
    %c2 = arith.constant 2 : index
    %c0_15 = arith.constant 0 : index
    %28 = vector.load %arg0[%c2, %c0_15] : memref<4x16xf32, #tpu.memory_space<vmem>>, vector<1x16xf32>
    %c3 = arith.constant 3 : index
    %c0_16 = arith.constant 0 : index
    %29 = vector.load %arg0[%c3, %c0_16] : memref<4x16xf32, #tpu.memory_space<vmem>>, vector<1x16xf32>
    %30 = arith.maximumf %28, %29 : vector<1x16xf32>
    %31 = arith.subf %28, %30 : vector<1x16xf32>
    %32 = math.exp %31 : vector<1x16xf32>
    %33 = arith.subf %29, %30 : vector<1x16xf32>
    %34 = math.exp %33 : vector<1x16xf32>
    %35 = arith.addf %32, %34 : vector<1x16xf32>
    %36 = math.log %35 : vector<1x16xf32>
    %37 = arith.addf %30, %36 : vector<1x16xf32>
    %c2_17 = arith.constant 2 : index
    %c0_18 = arith.constant 0 : index
    %38 = vector.load %arg1[%c2_17, %c0_18] : memref<4x16xf32, #tpu.memory_space<vmem>>, vector<1x16xf32>
    %cst_19 = arith.constant 3.000000e-01 : f32
    %39 = vector.broadcast %cst_19 : f32 to vector<1x16xf32>
    %40 = arith.cmpf oge, %38, %39 : vector<1x16xf32>
    %41 = arith.subf %28, %37 : vector<1x16xf32>
    %cst_20 = arith.constant 1.42857146 : f32
    %42 = vector.broadcast %cst_20 : f32 to vector<1x16xf32>
    %43 = arith.mulf %41, %42 : vector<1x16xf32>
    %cst_21 = arith.constant 0.000000e+00 : f32
    %44 = vector.broadcast %cst_21 : f32 to vector<1x16xf32>
    %45 = arith.select %40, %43, %44 : vector<1x16xi1>, vector<1x16xf32>
    %c2_22 = arith.constant 2 : index
    %c0_23 = arith.constant 0 : index
    %46 = vector.load %arg2[%c2_22, %c0_23] : memref<4x16xf32, #tpu.memory_space<vmem>>, vector<1x16xf32>
    tpu.vector_store %arg2[%c2_22, %c0_23], %45 {strides = array<i32>} : memref<4x16xf32, #tpu.memory_space<vmem>>, vector<1x16xf32>,
    %c3_24 = arith.constant 3 : index
    %c0_25 = arith.constant 0 : index
    %47 = vector.load %arg1[%c3_24, %c0_25] : memref<4x16xf32, #tpu.memory_space<vmem>>, vector<1x16xf32>
    %cst_26 = arith.constant 3.000000e-01 : f32
    %48 = vector.broadcast %cst_26 : f32 to vector<1x16xf32>
    %49 = arith.cmpf oge, %47, %48 : vector<1x16xf32>
    %50 = arith.subf %29, %37 : vector<1x16xf32>
    %cst_27 = arith.constant 1.42857146 : f32
    %51 = vector.broadcast %cst_27 : f32 to vector<1x16xf32>
    %52 = arith.mulf %50, %51 : vector<1x16xf32>
    %cst_28 = arith.constant 0.000000e+00 : f32
    %53 = vector.broadcast %cst_28 : f32 to vector<1x16xf32>
    %54 = arith.select %49, %52, %53 : vector<1x16xi1>, vector<1x16xf32>
    %c3_29 = arith.constant 3 : index
    %c0_30 = arith.constant 0 : index
    %55 = vector.load %arg2[%c3_29, %c0_30] : memref<4x16xf32, #tpu.memory_space<vmem>>, vector<1x16xf32>
    tpu.vector_store %arg2[%c3_29, %c0_30], %54 {strides = array<i32>} : memref<4x16xf32, #tpu.memory_space<vmem>>, vector<1x16xf32>,
    return
  }
}

</mosaic_0001>

<llo_original>
// kernel: tpu_custom_call.1
$region0: #{tpu_custom_call.1}
  #allocation0 [shape = 'u32[]', space=smem, size = 0x4, offset = 0x4, fixed_abs, tag = 'smem constant byte address 0x4 - core index']
  #allocation1 [shape = 'u32[144,128]{1,0:T(1,128)}', space=vmem, size = 0x12000, scoped, tag = 'internal scratch']
  %s0 = inlined_call_operand.hbm [shape: f32[4,16], index: 0, kind: input, shape index: {}]
  %s1 = inlined_call_operand.hbm [shape: f32[4,16], index: 1, kind: input, shape index: {}]
  %s2 = inlined_call_operand.hbm [shape: f32[4,16], index: 2, kind: output, shape index: {}]
  %s3 = sld [smem:[#allocation0]]
  $region26: #{tpu_custom_call.1} parent=0
    _
  %s5 = ssub.s32 1, %s3
  %s6 = scalar_select 0, %s5, %s3
  $region1: #{tpu_custom_call.1} parent=0
    #allocation2 [shape = 'u8[2048]{0}', space=vmem, size = 0x800, scoped, tag = 'input window, operand 0, single buffered']
    #allocation3 [shape = 's32[1]{0}', space=sflag, size = 0x4, scoped, tag = 'scoped memory for tpu_custom_call.1']
    #allocation4 [shape = 's32[1]{0}', space=sflag, size = 0x4, scoped, tag = 'scoped memory for tpu_custom_call.1']
    #allocation5 [shape = 'u8[2048]{0}', space=vmem, size = 0x800, scoped, tag = 'input window, operand 1, single buffered']
    #allocation6 [shape = 's32[1]{0}', space=sflag, size = 0x4, scoped, tag = 'scoped memory for tpu_custom_call.1']
    #allocation7 [shape = 'u8[2048]{0}', space=vmem, size = 0x800, scoped, tag = 'output window, operand 0, single buffered']
    %7 = vsyncpa [#allocation3], 0
    %8 = vsyncpa [#allocation6], 0
    %9 = vsyncpa [#allocation4], 0
    // Predicated region
    $region2: #{tpu_custom_call.1} parent=1 // pred_check
      _
    $region3: #{tpu_custom_call.1} parent=1 // pred_check_branch
      %11 = sbr.rel (0) target = $region5
    $region4: #{tpu_custom_call.1} parent=1 // pred_region
      %s13 = ssub.s32 64, 64
      %14 = vsyncadd [#allocation3], %s13
      %s16 = sshll.u32 [#allocation2], 4
      %s17 = int_to_ptr.vmem [resolvable:$true] %s16
      %19 = dma.hbm_to_vmem [thread:$0]  %s0, 64, %s17, [#allocation3]
    $region5: #{tpu_custom_call.1} parent=1 // pred_fallthru
      _
    // Predicated region
    $region6: #{tpu_custom_call.1} parent=1 // pred_check
      _
    $region7: #{tpu_custom_call.1} parent=1 // pred_check_branch
      %21 = sbr.rel (0) target = $region9
    $region8: #{tpu_custom_call.1} parent=1 // pred_region
      %s23 = ssub.s32 64, 64
      %24 = vsyncadd [#allocation6], %s23
      %s26 = sshll.u32 [#allocation5], 4
      %s27 = int_to_ptr.vmem [resolvable:$true] %s26
      %29 = dma.hbm_to_vmem [thread:$0]  %s1, 64, %s27, [#allocation6]
    $region9: #{tpu_custom_call.1} parent=1 // pred_fallthru
      _
    // Predicated region
    $region10: #{tpu_custom_call.1} parent=1 // pred_check
      _
    $region11: #{tpu_custom_call.1} parent=1 // pred_check_branch
      %31 = sbr.rel (0) target = $region13
    $region12: #{tpu_custom_call.1} parent=1 // pred_region
      %32 = dma.done [#allocation3], 64
    $region13: #{tpu_custom_call.1} parent=1 // pred_fallthru
      _
    // Predicated region
    $region14: #{tpu_custom_call.1} parent=1 // pred_check
      _
    $region15: #{tpu_custom_call.1} parent=1 // pred_check_branch
      %34 = sbr.rel (0) target = $region17
    $region16: #{tpu_custom_call.1} parent=1 // pred_region
      %35 = dma.done [#allocation6], 64
    $region17: #{tpu_custom_call.1} parent=1 // pred_fallthru
      _
    %v36 = vld [vmem:[#allocation2] sm:$0x1]
    %v37 = vld [vmem:[#allocation2 + $0x1] sm:$0x1]
    %v38 = vmax.f32 %v36, %v37
    %v39 = vsub.f32 %v36, %v38
    %v40 = vmul.f32 %v39, 1.442695
    %v41 = vpow.pop %v40
    %v42 = vsub.f32 %v37, %v38
    %v43 = vmul.f32 %v42, 1.442695
    %v44 = vpow.pop %v43
    %v45 = vadd.f32 %v41, %v44
    %v46 = vlog2.pop %v45
    %v47 = vmul.f32 %v46, 0.6931472
    %v48 = vadd.f32 %v38, %v47
    %v49 = vld [vmem:[#allocation5] sm:$0x1]
    %vm50 = vcmp.ge.f32.partialorder %v49, 0.3
    %v51 = vsub.f32 %v36, %v48
    %v52 = vmul.f32 %v51, 1.4285715
    %v53 = vsel %vm50, %v52, 0.0
    %vm54 = vcmask 122880
    %55 = vst.msk [vmem:[#allocation7] sm:$0x1] %vm54, %v53
    %v56 = vld [vmem:[#allocation5 + $0x1] sm:$0x1]
    %vm57 = vcmp.ge.f32.partialorder %v56, 0.3
    %v58 = vsub.f32 %v37, %v48
    %v59 = vmul.f32 %v58, 1.4285715
    %v60 = vsel %vm57, %v59, 0.0
    %61 = vst.msk [vmem:[#allocation7 + $0x1] sm:$0x1] %vm54, %v60
    %v62 = vld [vmem:[#allocation2 + $0x2] sm:$0x1]
    %v63 = vld [vmem:[#allocation2 + $0x3] sm:$0x1]
    %v64 = vmax.f32 %v62, %v63
    %v65 = vsub.f32 %v62, %v64
    %v66 = vmul.f32 %v65, 1.442695
    %v67 = vpow.pop %v66
    %v68 = vsub.f32 %v63, %v64
    %v69 = vmul.f32 %v68, 1.442695
    %v70 = vpow.pop %v69
    %v71 = vadd.f32 %v67, %v70
    %v72 = vlog2.pop %v71
    %v73 = vmul.f32 %v72, 0.6931472
    %v74 = vadd.f32 %v64, %v73
    %v75 = vld [vmem:[#allocation5 + $0x2] sm:$0x1]
    %vm76 = vcmp.ge.f32.partialorder %v75, 0.3
    %v77 = vsub.f32 %v62, %v74
    %v78 = vmul.f32 %v77, 1.4285715
    %v79 = vsel %vm76, %v78, 0.0
    %80 = vst.msk [vmem:[#allocation7 + $0x2] sm:$0x1] %vm54, %v79
    %v81 = vld [vmem:[#allocation5 + $0x3] sm:$0x1]
    %vm82 = vcmp.ge.f32.partialorder %v81, 0.3
    %v83 = vsub.f32 %v63, %v74
    %v84 = vmul.f32 %v83, 1.4285715
    %v85 = vsel %vm82, %v84, 0.0
    %86 = vst.msk [vmem:[#allocation7 + $0x3] sm:$0x1] %vm54, %v85
    // Predicated region
    $region18: #{tpu_custom_call.1} parent=1 // pred_check
      _
    $region19: #{tpu_custom_call.1} parent=1 // pred_check_branch
      %88 = sbr.rel (0) target = $region21
    $region20: #{tpu_custom_call.1} parent=1 // pred_region
      %s90 = ssub.s32 64, 64
      %91 = vsyncadd [#allocation4], %s90
      %s93 = sshll.u32 [#allocation7], 4
      %s94 = int_to_ptr.vmem [resolvable:$true] %s93
      %96 = dma.vmem_to_hbm [thread:$0]  %s94, 64, %s2, [#allocation4]
    $region21: #{tpu_custom_call.1} parent=1 // pred_fallthru
      _
    // Predicated region
    $region22: #{tpu_custom_call.1} parent=1 // pred_check
      _
    $region23: #{tpu_custom_call.1} parent=1 // pred_check_branch
      %98 = sbr.rel (0) target = $region25
    $region24: #{tpu_custom_call.1} parent=1 // pred_region
      %99 = dma.done [#allocation4], 64
    $region25: #{tpu_custom_call.1} parent=1 // pred_fallthru
      _
    %100 = vsyncpa [#allocation3], 1
    %101 = vsyncpa [#allocation6], 1
    %102 = vsyncpa [#allocation4], 1

</llo_original>
